<compile_context>
chip_gen: v7x
topology: tpu7x:2x2x1
jax: 0.10.0
libtpu: 0.0.40
codegen_flags: <defaults>
</compile_context>

<pallas_src>
import functools

import jax
import jax.numpy as jnp
from jax.experimental import pallas as pl
from jax.experimental.pallas import tpu as pltpu


def _round_up(v, mult):
    return ((v + mult - 1) // mult) * mult


def _round_down(v, mult):
    return max(mult, (v // mult) * mult)


def _add_margin_kernel(x_ref, w_ref, inv_x_ref, inv_w_ref, lbl_ref, o_ref, *, s, m):
    # x: (TM, Dp) bf16, w: (TN, Dp) bf16, inv_x: (TM, 1) f32, inv_w: (1, TN) f32,
    # lbl: (TM, 1) i32, o: (TM, TN) f32
    j = pl.program_id(1)          # class-tile index
    tn = o_ref.shape[1]

    # Raw (un-normalized) matmul on the MXU: bf16 operands, f32 accumulation.
    # Contract both operands over their last (lane) dim -> no W.T materialization.
    cos_raw = jax.lax.dot_general(
        x_ref[...], w_ref[...], (((1,), (1,)), ((), ())),
        preferred_element_type=jnp.float32)                               # (TM, TN)

    # s * cosine == cos_raw * (s * inv_x) * inv_w.  Inverse norms are computed
    # once in the wrapper (f32), so this epilogue is two (TM, TN) multiplies.
    cos_scaled = cos_raw * (inv_x_ref[...] * s) * inv_w_ref[...]

    # Additive margin on the target class, compared against the GLOBAL class
    # index, folded into one select (no full (TM, TN) margin temporary).
    col = jax.lax.broadcasted_iota(jnp.int32, cos_scaled.shape, 1) + j * tn
    o_ref[...] = jnp.where(col == lbl_ref[...],
                           cos_scaled - jnp.float32(s * m),
                           cos_scaled).astype(o_ref.dtype)


def _choose_tiles(B, C, d_pad, budget_bytes=12 * 1024 * 1024):
    """Pick (TM, TN) lane/sublane-aligned tiles under a VMEM budget."""
    tm = min(512, _round_up(B, 8))
    tn = min(512, _round_up(C, 128))

    def footprint(tm_, tn_):
        # Double-buffered bf16 x / W tiles + double-buffered f32 out tile
        # + tiny inv_x / inv_w / label blocks.
        return (2 * (tm_ * d_pad * 2 + tn_ * d_pad * 2 + tm_ * tn_ * 4)
                + 2 * (tm_ * 8 + tn_ * 4))

    while footprint(tm, tn) > budget_bytes and (tn > 128 or tm > 8):
        if tn >= tm and tn > 128:
            tn = _round_down(tn // 2, 128)
        elif tm > 8:
            tm = _round_down(tm // 2, 8)
        else:
            break
    return tm, tn


def add_margin_product(x, weight, label, *, s=30.0, m=0.4):
    """x: (B, D) f32, weight: (C, D) f32, label: (B,) int -> (B, C) f32."""
    B, D = x.shape
    C, D2 = weight.shape
    assert D == D2

    # Pad D to a multiple of 128 (full lane density; zeros are exact for the
    # matmul), pick tiles, then pad B / C up to the tile grid.
    D_pad = _round_up(D, 128)
    TM, TN = _choose_tiles(B, C, D_pad)
    B_pad = _round_up(B, TM)
    C_pad = _round_up(C, TN)

    x32 = x.astype(jnp.float32)
    w32 = weight.astype(jnp.float32)

    # Hoisted inverse norms (f32, eps semantics of F.normalize: clamp the
    # squared sum at 1e-24 == eps 1e-12 on the norm).  Padded entries are 0.
    inv_x = jax.lax.rsqrt(
        jnp.maximum(jnp.sum(x32 * x32, axis=-1, keepdims=True), 1e-24))   # (B, 1)
    inv_w = jax.lax.rsqrt(
        jnp.maximum(jnp.sum(w32 * w32, axis=-1, keepdims=True), 1e-24)).T  # (1, C)
    inv_x = jnp.pad(inv_x, ((0, B_pad - B), (0, 0)))
    inv_w = jnp.pad(inv_w, ((0, 0), (0, C_pad - C)))

    # bf16 matmul operands (halved HBM traffic / VMEM footprint).
    x_p = jnp.pad(x32, ((0, B_pad - B), (0, D_pad - D))).astype(jnp.bfloat16)
    w_p = jnp.pad(w32, ((0, C_pad - C), (0, D_pad - D))).astype(jnp.bfloat16)

    # Padded rows get label -1 -> never matches a class column.
    lbl = jnp.full((B_pad, 1), -1, jnp.int32).at[:B, 0].set(label.astype(jnp.int32))

    # Class tiles innermost: W is streamed / double-buffered per batch tile;
    # the large TM keeps the number of W re-reads (B_pad / TM) small.
    grid = (B_pad // TM, C_pad // TN)
    kernel = functools.partial(_add_margin_kernel, s=float(s), m=float(m))

    out = pl.pallas_call(
        kernel,
        out_shape=jax.ShapeDtypeStruct((B_pad, C_pad), jnp.float32),
        grid=grid,
        in_specs=[
            pl.BlockSpec((TM, D_pad), lambda i, j: (i, 0)),   # x tile (constant over j)
            pl.BlockSpec((TN, D_pad), lambda i, j: (j, 0)),   # W tile (streamed over j)
            pl.BlockSpec((TM, 1), lambda i, j: (i, 0)),       # inv_x for this batch tile
            pl.BlockSpec((1, TN), lambda i, j: (0, j)),       # inv_w for this class tile
            pl.BlockSpec((TM, 1), lambda i, j: (i, 0)),       # labels for this batch tile
        ],
        out_specs=pl.BlockSpec((TM, TN), lambda i, j: (i, j)),
        compiler_params=pltpu.CompilerParams(
            # Both axes independent -> megacore-shardable on v7x (no-op elsewhere).
            dimension_semantics=("parallel", "parallel")),
    )(x_p, w_p, inv_x, inv_w, lbl)

    return out[:B, :C]


def _xavier_uniform(key, out_features, in_features):
    # torch.nn.init.xavier_uniform_ on a (out, in) matrix.
    bound = (6.0 / (in_features + out_features)) ** 0.5
    return jax.random.uniform(
        key, (out_features, in_features), jnp.float32, -bound, bound)


if __name__ == "__main__":
    # Small shapes that still exercise D padding (64 -> 128), batch padding
    # (B=12 -> 16) and a non-trivial class extent (C=384).
    B, in_features, out_features = 12, 64, 384
    s, m = 30.0, 0.4

    key = jax.random.PRNGKey(0)
    kx, kw, kl = jax.random.split(key, 3)

    x = jax.random.normal(kx, (B, in_features), jnp.float32)
    weight = _xavier_uniform(kw, out_features, in_features)
    label = jax.random.randint(kl, (B,), 0, out_features, jnp.int32)

    out = add_margin_product(x, weight, label, s=s, m=m)
    out = jax.block_until_ready(out)

    # Pure-f32 reference (PyTorch semantics).
    xn = x / jnp.maximum(jnp.linalg.norm(x, axis=1, keepdims=True), 1e-12)
    wn = weight / jnp.maximum(jnp.linalg.norm(weight, axis=1, keepdims=True), 1e-12)
    cos = xn @ wn.T
    one_hot = jax.nn.one_hot(label, out_features, dtype=jnp.float32)
    ref = s * (one_hot * (cos - m) + (1.0 - one_hot) * cos)

    assert out.shape == (B, out_features)
    # bf16 MXU operands (f32 accumulate) => tolerance looser than pure f32;
    # worst-case |err| <= s * 2^-8 ~= 0.12 for unit-norm rows.
    max_err = float(jnp.max(jnp.abs(out - ref)))
    assert jnp.allclose(out, ref, atol=2.5e-1, rtol=2e-2), max_err

    print("KERNEL_OK")
</pallas_src>

<mosaic_0001>
module attributes {stable_mosaic.version = 11 : i64} {
  func.func @_add_margin_kernel(%arg0: i32, %arg1: i32, %arg2: memref<16x128xbf16, #tpu.memory_space<vmem>>, %arg3: memref<384x128xbf16, #tpu.memory_space<vmem>>, %arg4: memref<16x1xf32, #tpu.memory_space<vmem>>, %arg5: memref<1x384xf32, #tpu.memory_space<vmem>>, %arg6: memref<16x1xi32, #tpu.memory_space<vmem>>, %arg7: memref<16x384xf32, #tpu.memory_space<vmem>>) attributes {dimension_semantics = [#tpu.dimension_semantics<parallel>, #tpu.dimension_semantics<parallel>], iteration_bounds = array<i64: 1, 1>, scalar_prefetch = 0 : i64, scratch_operands = 0 : i64, tpu.core_type = #tpu.core_type<tc>, window_params = [{transform_indices = @transform_0, window_bounds = array<i64: 16, 128>}, {transform_indices = @transform_1, window_bounds = array<i64: 384, 128>}, {transform_indices = @transform_2, window_bounds = array<i64: 16, 1>}, {transform_indices = @transform_3, window_bounds = array<i64: 1, 384>}, {transform_indices = @transform_4, window_bounds = array<i64: 16, 1>}, {transform_indices = @transform_5, window_bounds = array<i64: 16, 384>}]} {
    %c0 = arith.constant 0 : index
    %c0_0 = arith.constant 0 : index
    %0 = vector.load %arg2[%c0, %c0_0] : memref<16x128xbf16, #tpu.memory_space<vmem>>, vector<16x128xbf16>
    %c0_1 = arith.constant 0 : index
    %c0_2 = arith.constant 0 : index
    %1 = vector.load %arg3[%c0_1, %c0_2] : memref<384x128xbf16, #tpu.memory_space<vmem>>, vector<384x128xbf16>
    %cst = arith.constant dense<0.000000e+00> : vector<16x384xf32>
    %2 = tpu.matmul %0, %1, %cst {dimension_numbers = #tpu.dot_dimension_numbers<[1], [1], [0], [0], [0, 0, 1, 0], [], []>} : vector<16x128xbf16>, vector<384x128xbf16>, vector<16x384xf32> -> vector<16x384xf32>
    %c0_3 = arith.constant 0 : index
    %c0_4 = arith.constant 0 : index
    %3 = vector.load %arg4[%c0_3, %c0_4] : memref<16x1xf32, #tpu.memory_space<vmem>>, vector<16x1xf32>
    %cst_5 = arith.constant 3.000000e+01 : f32
    %4 = vector.broadcast %cst_5 : f32 to vector<16x1xf32>
    %5 = arith.mulf %3, %4 : vector<16x1xf32>
    %6 = vector.broadcast %5 : vector<16x1xf32> to vector<16x384xf32>
    %7 = arith.mulf %2, %6 : vector<16x384xf32>
    %c0_6 = arith.constant 0 : index
    %c0_7 = arith.constant 0 : index
    %8 = vector.load %arg5[%c0_6, %c0_7] : memref<1x384xf32, #tpu.memory_space<vmem>>, vector<1x384xf32>
    %9 = vector.broadcast %8 : vector<1x384xf32> to vector<16x384xf32>
    %10 = arith.mulf %7, %9 : vector<16x384xf32>
    %11 = tpu.iota {dimensions = array<i32: 1>} : vector<16x384xi32>
    %c384_i32 = arith.constant 384 : i32
    %12 = arith.muli %arg1, %c384_i32 : i32
    %13 = vector.broadcast %12 : i32 to vector<16x384xi32>
    %14 = arith.addi %11, %13 : vector<16x384xi32>
    %c0_8 = arith.constant 0 : index
    %c0_9 = arith.constant 0 : index
    %15 = vector.load %arg6[%c0_8, %c0_9] : memref<16x1xi32, #tpu.memory_space<vmem>>, vector<16x1xi32>
    %16 = vector.broadcast %15 : vector<16x1xi32> to vector<16x384xi32>
    %17 = arith.cmpi eq, %14, %16 : vector<16x384xi32>
    %cst_10 = arith.constant 1.200000e+01 : f32
    %18 = vector.broadcast %cst_10 : f32 to vector<16x384xf32>
    %19 = arith.subf %10, %18 : vector<16x384xf32>
    %20 = arith.select %17, %19, %10 : vector<16x384xi1>, vector<16x384xf32>
    %c0_11 = arith.constant 0 : index
    %c0_12 = arith.constant 0 : index
    %21 = vector.load %arg7[%c0_11, %c0_12] : memref<16x384xf32, #tpu.memory_space<vmem>>, vector<16x384xf32>
    tpu.vector_store %arg7[%c0_11, %c0_12], %20 {strides = array<i32>} : memref<16x384xf32, #tpu.memory_space<vmem>>, vector<16x384xf32>,
    return
  }
  func.func @transform_0(%arg0: i32, %arg1: i32) -> (i32, i32) {
    %c0_i32 = arith.constant 0 : i32
    %c0_i32_0 = arith.constant 0 : i32
    return %arg0, %c0_i32 : i32, i32
  }
  func.func @transform_1(%arg0: i32, %arg1: i32) -> (i32, i32) {
    %c0_i32 = arith.constant 0 : i32
    %c0_i32_0 = arith.constant 0 : i32
    return %arg1, %c0_i32 : i32, i32
  }
  func.func @transform_2(%arg0: i32, %arg1: i32) -> (i32, i32) {
    %c0_i32 = arith.constant 0 : i32
    %c0_i32_0 = arith.constant 0 : i32
    return %arg0, %c0_i32 : i32, i32
  }
  func.func @transform_3(%arg0: i32, %arg1: i32) -> (i32, i32) {
    %c0_i32 = arith.constant 0 : i32
    %c0_i32_0 = arith.constant 0 : i32
    return %c0_i32, %arg1 : i32, i32
  }
  func.func @transform_4(%arg0: i32, %arg1: i32) -> (i32, i32) {
    %c0_i32 = arith.constant 0 : i32
    %c0_i32_0 = arith.constant 0 : i32
    return %arg0, %c0_i32 : i32, i32
  }
  func.func @transform_5(%arg0: i32, %arg1: i32) -> (i32, i32) {
    %c0_i32 = arith.constant 0 : i32
    return %arg0, %arg1 : i32, i32
  }
}

</mosaic_0001>

<llo_original>
// kernel: tpu_custom_call.1
$region0: #{tpu_custom_call.1}
  #allocation0 [shape = 'u32[]', space=smem, size = 0x4, offset = 0x4, fixed_abs, tag = 'smem constant byte address 0x4 - core index']
  #allocation1 [shape = 'u32[144,128]{1,0:T(1,128)}', space=vmem, size = 0x12000, scoped, tag = 'internal scratch']
  %s0 = inlined_call_operand.vmem [shape: bf16[16,128], index: 0, kind: input, shape index: {}]
  %s1 = inlined_call_operand.hbm [shape: bf16[384,128], index: 1, kind: input, shape index: {}]
  %s2 = inlined_call_operand.vmem [shape: f32[16,1], index: 2, kind: input, shape index: {}]
  %s3 = inlined_call_operand.vmem [shape: f32[1,384], index: 3, kind: input, shape index: {}]
  %s4 = inlined_call_operand.vmem [shape: s32[16,1], index: 4, kind: input, shape index: {}]
  %s5 = inlined_call_operand.hbm [shape: f32[16,384], index: 5, kind: output, shape index: {}]
  %s6 = sld [smem:[#allocation0]]
  $region34: #{tpu_custom_call.1} parent=0
    _
  %s8 = ssub.s32 1, %s6
  %s9 = scalar_select 0, %s8, %s6
  $region1: #{tpu_custom_call.1} parent=0
    #allocation2 [shape = 'u8[98304]{0}', space=vmem, size = 0x18000, scoped, tag = 'input window, operand 1, single buffered']
    #allocation3 [shape = 's32[1]{0}', space=sflag, size = 0x4, scoped, tag = 'scoped memory for tpu_custom_call.1']
    #allocation4 [shape = 's32[1]{0}', space=sflag, size = 0x4, scoped, tag = 'scoped memory for tpu_custom_call.1']
    #allocation5 [shape = 'u8[24576]{0}', space=vmem, size = 0x6000, scoped, tag = 'output window, operand 0, single buffered']
    %10 = vsyncpa [#allocation3], 0
    %11 = vsyncpa [#allocation4], 0
    // Predicated region
    $region2: #{tpu_custom_call.1} parent=1 // pred_check
      _
    $region3: #{tpu_custom_call.1} parent=1 // pred_check_branch
      %13 = sbr.rel (0) target = $region5
    $region4: #{tpu_custom_call.1} parent=1 // pred_region
      _
    $region5: #{tpu_custom_call.1} parent=1 // pred_fallthru
      _
    // Predicated region
    $region6: #{tpu_custom_call.1} parent=1 // pred_check
      _
    $region7: #{tpu_custom_call.1} parent=1 // pred_check_branch
      %15 = sbr.rel (0) target = $region9
    $region8: #{tpu_custom_call.1} parent=1 // pred_region
      %s17 = ssub.s32 3072, 3072
      %18 = vsyncadd [#allocation3], %s17
      %s19 = sshll.u32 [#allocation2], 4
      %s20 = int_to_ptr.vmem [resolvable:$true] %s19
      %25 = dma.hbm_to_vmem [thread:$0]  %s1, 3072, %s20, [#allocation3], 64, 64, 4
    $region9: #{tpu_custom_call.1} parent=1 // pred_fallthru
      _
    // Predicated region
    $region10: #{tpu_custom_call.1} parent=1 // pred_check
      _
    $region11: #{tpu_custom_call.1} parent=1 // pred_check_branch
      %27 = sbr.rel (0) target = $region13
    $region12: #{tpu_custom_call.1} parent=1 // pred_region
      _
    $region13: #{tpu_custom_call.1} parent=1 // pred_fallthru
      _
    // Predicated region
    $region14: #{tpu_custom_call.1} parent=1 // pred_check
      _
    $region15: #{tpu_custom_call.1} parent=1 // pred_check_branch
      %29 = sbr.rel (0) target = $region17
    $region16: #{tpu_custom_call.1} parent=1 // pred_region
      _
    $region17: #{tpu_custom_call.1} parent=1 // pred_fallthru
      _
    // Predicated region
    $region18: #{tpu_custom_call.1} parent=1 // pred_check
      _
    $region19: #{tpu_custom_call.1} parent=1 // pred_check_branch
      %31 = sbr.rel (0) target = $region21
    $region20: #{tpu_custom_call.1} parent=1 // pred_region
      _
    $region21: #{tpu_custom_call.1} parent=1 // pred_fallthru
      _
    // Predicated region
    $region22: #{tpu_custom_call.1} parent=1 // pred_check
      _
    $region23: #{tpu_custom_call.1} parent=1 // pred_check_branch
      %33 = sbr.rel (0) target = $region25
    $region24: #{tpu_custom_call.1} parent=1 // pred_region
      %34 = dma.done [#allocation3], 3072
    $region25: #{tpu_custom_call.1} parent=1 // pred_fallthru
      _
    %v36 = vld [vmem:[%s0] sm:$0xf]
    %v37 = vld [vmem:[%s0 + $0x4] sm:$0xf]
    %v38 = vld [vmem:[#allocation2] sm:$0xf]
    %v39 = vld [vmem:[#allocation2 + $0x4] sm:$0xf]
    %v40 = vld [vmem:[#allocation2 + $0x8] sm:$0xf]
    %v41 = vld [vmem:[#allocation2 + $0xc] sm:$0xf]
    %v42 = vld [vmem:[#allocation2 + $0x10] sm:$0xf]
    %v43 = vld [vmem:[#allocation2 + $0x14] sm:$0xf]
    %v44 = vld [vmem:[#allocation2 + $0x18] sm:$0xf]
    %v45 = vld [vmem:[#allocation2 + $0x1c] sm:$0xf]
    %v46 = vld [vmem:[#allocation2 + $0x20] sm:$0xf]
    %v47 = vld [vmem:[#allocation2 + $0x24] sm:$0xf]
    %v48 = vld [vmem:[#allocation2 + $0x28] sm:$0xf]
    %v49 = vld [vmem:[#allocation2 + $0x2c] sm:$0xf]
    %v50 = vld [vmem:[#allocation2 + $0x30] sm:$0xf]
    %v51 = vld [vmem:[#allocation2 + $0x34] sm:$0xf]
    %v52 = vld [vmem:[#allocation2 + $0x38] sm:$0xf]
    %v53 = vld [vmem:[#allocation2 + $0x3c] sm:$0xf]
    %v54 = vld [vmem:[#allocation2 + $0x40] sm:$0xf]
    %v55 = vld [vmem:[#allocation2 + $0x44] sm:$0xf]
    %v56 = vld [vmem:[#allocation2 + $0x48] sm:$0xf]
    %v57 = vld [vmem:[#allocation2 + $0x4c] sm:$0xf]
    %v58 = vld [vmem:[#allocation2 + $0x50] sm:$0xf]
    %v59 = vld [vmem:[#allocation2 + $0x54] sm:$0xf]
    %v60 = vld [vmem:[#allocation2 + $0x58] sm:$0xf]
    %v61 = vld [vmem:[#allocation2 + $0x5c] sm:$0xf]
    %v62 = vld [vmem:[#allocation2 + $0x60] sm:$0xf]
    %v63 = vld [vmem:[#allocation2 + $0x64] sm:$0xf]
    %v64 = vld [vmem:[#allocation2 + $0x68] sm:$0xf]
    %v65 = vld [vmem:[#allocation2 + $0x6c] sm:$0xf]
    %v66 = vld [vmem:[#allocation2 + $0x70] sm:$0xf]
    %v67 = vld [vmem:[#allocation2 + $0x74] sm:$0xf]
    %v68 = vld [vmem:[#allocation2 + $0x78] sm:$0xf]
    %v69 = vld [vmem:[#allocation2 + $0x7c] sm:$0xf]
    %v70 = vld [vmem:[#allocation2 + $0x80] sm:$0xf]
    %v71 = vld [vmem:[#allocation2 + $0x84] sm:$0xf]
    %v72 = vld [vmem:[#allocation2 + $0x88] sm:$0xf]
    %v73 = vld [vmem:[#allocation2 + $0x8c] sm:$0xf]
    %v74 = vld [vmem:[#allocation2 + $0x90] sm:$0xf]
    %v75 = vld [vmem:[#allocation2 + $0x94] sm:$0xf]
    %v76 = vld [vmem:[#allocation2 + $0x98] sm:$0xf]
    %v77 = vld [vmem:[#allocation2 + $0x9c] sm:$0xf]
    %v78 = vld [vmem:[#allocation2 + $0xa0] sm:$0xf]
    %v79 = vld [vmem:[#allocation2 + $0xa4] sm:$0xf]
    %v80 = vld [vmem:[#allocation2 + $0xa8] sm:$0xf]
    %v81 = vld [vmem:[#allocation2 + $0xac] sm:$0xf]
    %v82 = vld [vmem:[#allocation2 + $0xb0] sm:$0xf]
    %v83 = vld [vmem:[#allocation2 + $0xb4] sm:$0xf]
    %v84 = vld [vmem:[#allocation2 + $0xb8] sm:$0xf]
    %v85 = vld [vmem:[#allocation2 + $0xbc] sm:$0xf]
    %v88 = vunpack.c.l.b16 %v36
    %v89 = vunpack.c.l.b16 %v37
    %v90 = vpack.c.b16 %v89, %v88
    %v140 = vunpack.c.l.b16 %v38
    %v141 = vunpack.c.l.b16 %v39
    %v142 = vunpack.c.l.b16 %v40
    %v143 = vunpack.c.l.b16 %v41
    %v144 = vunpack.c.l.b16 %v42
    %v145 = vunpack.c.l.b16 %v43
    %v146 = vunpack.c.l.b16 %v44
    %v147 = vunpack.c.l.b16 %v45
    %v148 = vunpack.c.l.b16 %v46
    %v149 = vunpack.c.l.b16 %v47
    %v150 = vunpack.c.l.b16 %v48
    %v151 = vunpack.c.l.b16 %v49
    %v152 = vunpack.c.l.b16 %v50
    %v153 = vunpack.c.l.b16 %v51
    %v154 = vunpack.c.l.b16 %v52
    %v155 = vunpack.c.l.b16 %v53
    %v156 = vunpack.c.l.b16 %v54
    %v157 = vunpack.c.l.b16 %v55
    %v158 = vunpack.c.l.b16 %v56
    %v159 = vunpack.c.l.b16 %v57
    %v160 = vunpack.c.l.b16 %v58
    %v161 = vunpack.c.l.b16 %v59
    %v162 = vunpack.c.l.b16 %v60
    %v163 = vunpack.c.l.b16 %v61
    %v164 = vunpack.c.l.b16 %v62
    %v165 = vunpack.c.l.b16 %v63
    %v166 = vunpack.c.l.b16 %v64
    %v167 = vunpack.c.l.b16 %v65
    %v168 = vunpack.c.l.b16 %v66
    %v169 = vunpack.c.l.b16 %v67
    %v170 = vunpack.c.l.b16 %v68
    %v171 = vunpack.c.l.b16 %v69
    %v172 = vunpack.c.l.b16 %v70
    %v173 = vunpack.c.l.b16 %v71
    %v174 = vunpack.c.l.b16 %v72
    %v175 = vunpack.c.l.b16 %v73
    %v176 = vunpack.c.l.b16 %v74
    %v177 = vunpack.c.l.b16 %v75
    %v178 = vunpack.c.l.b16 %v76
    %v179 = vunpack.c.l.b16 %v77
    %v180 = vunpack.c.l.b16 %v78
    %v181 = vunpack.c.l.b16 %v79
    %v182 = vunpack.c.l.b16 %v80
    %v183 = vunpack.c.l.b16 %v81
    %v184 = vunpack.c.l.b16 %v82
    %v185 = vunpack.c.l.b16 %v83
    %v186 = vunpack.c.l.b16 %v84
    %v187 = vunpack.c.l.b16 %v85
    %v188 = vpack.c.b16 %v141, %v140
    %v189 = vpack.c.b16 %v143, %v142
    %v190 = vpack.c.b16 %v145, %v144
    %v191 = vpack.c.b16 %v147, %v146
    %v192 = vpack.c.b16 %v149, %v148
    %v193 = vpack.c.b16 %v151, %v150
    %v194 = vpack.c.b16 %v153, %v152
    %v195 = vpack.c.b16 %v155, %v154
    %v196 = vpack.c.b16 %v157, %v156
    %v197 = vpack.c.b16 %v159, %v158
    %v198 = vpack.c.b16 %v161, %v160
    %v199 = vpack.c.b16 %v163, %v162
    %v200 = vpack.c.b16 %v165, %v164
    %v201 = vpack.c.b16 %v167, %v166
    %v202 = vpack.c.b16 %v169, %v168
    %v203 = vpack.c.b16 %v171, %v170
    %v204 = vpack.c.b16 %v173, %v172
    %v205 = vpack.c.b16 %v175, %v174
    %v206 = vpack.c.b16 %v177, %v176
    %v207 = vpack.c.b16 %v179, %v178
    %v208 = vpack.c.b16 %v181, %v180
    %v209 = vpack.c.b16 %v183, %v182
    %v210 = vpack.c.b16 %v185, %v184
    %v211 = vpack.c.b16 %v187, %v186
    %236 = vmatprep.subr.bf16.mxu0 0
    %237 = vmatpush1.bf16.xpose.msra.mxu0 %v188
    %238 = vmatprep.subr.bf16.mxu0 0
    %239 = vmatpush1.bf16.xpose.msra.mxu0 %v189
    %240 = vmatprep.subr.bf16.mxu0 0
    %241 = vmatpush1.bf16.xpose.msra.mxu0 %v190
    %242 = vmatprep.subr.bf16.mxu0 0
    %243 = vmatpush1.bf16.xpose.msra.mxu0 %v191
    %244 = vmatprep.subr.bf16.mxu0 0
    %245 = vmatpush1.bf16.xpose.msra.mxu0 %v192
    %246 = vmatprep.subr.bf16.mxu0 0
    %247 = vmatpush1.bf16.xpose.msra.mxu0 %v193
    %248 = vmatprep.subr.bf16.mxu0 0
    %249 = vmatpush1.bf16.xpose.msra.mxu0 %v194
    %250 = vmatprep.subr.bf16.mxu0 0
    %251 = vmatpush1.bf16.xpose.msra.mxu0 %v195
    %252 = vmatprep.subr.bf16.mxu0 0
    %253 = vmatpush1.bf16.xpose.msra.mxu0 %v196
    %254 = vmatprep.subr.bf16.mxu0 0
    %255 = vmatpush1.bf16.xpose.msra.mxu0 %v197
    %256 = vmatprep.subr.bf16.mxu0 0
    %257 = vmatpush1.bf16.xpose.msra.mxu0 %v198
    %258 = vmatprep.subr.bf16.mxu0 0
    %259 = vmatpush1.bf16.xpose.msra.mxu0 %v199
    %260 = vmatprep.subr.bf16.mxu0 0
    %261 = vmatpush1.bf16.xpose.msra.mxu0 %v200
    %262 = vmatprep.subr.bf16.mxu0 0
    %263 = vmatpush1.bf16.xpose.msra.mxu0 %v201
    %264 = vmatprep.subr.bf16.mxu0 0
    %265 = vmatpush1.bf16.xpose.msra.mxu0 %v202
    %266 = vmatprep.subr.bf16.mxu0 0
    %267 = vmatpush1.bf16.xpose.msra.mxu0 %v203
    %268 = vmatprep.mubr.bf16.mxu0 0
    %269 = vmatmul.mubr.bf16.gmra.mrb[0].mxu0 %v90
    %v270 = vpop.f32.mrb[0].mxu0
    %v271 = vadd.f32 0.0, %v270
    %v272 = vpop.f32.mrb[0].mxu0
    %v273 = vadd.f32 0.0, %v272
    %v274 = vpop.f32.mrb[0].mxu0
    %v275 = vadd.f32 0.0, %v274
    %v276 = vpop.f32.mrb[0].mxu0
    %v277 = vadd.f32 0.0, %v276
    %278 = vdwg.mxu0
    %279 = vmatprep.subr.bf16.mxu0 0
    %280 = vmatpush1.bf16.xpose.msra.mxu0 %v204
    %281 = vmatprep.subr.bf16.mxu0 0
    %282 = vmatpush1.bf16.xpose.msra.mxu0 %v205
    %283 = vmatprep.subr.bf16.mxu0 0
    %284 = vmatpush1.bf16.xpose.msra.mxu0 %v206
    %285 = vmatprep.subr.bf16.mxu0 0
    %286 = vmatpush1.bf16.xpose.msra.mxu0 %v207
    %287 = vmatprep.subr.bf16.mxu0 0
    %288 = vmatpush1.bf16.xpose.msra.mxu0 %v208
    %289 = vmatprep.subr.bf16.mxu0 0
    %290 = vmatpush1.bf16.xpose.msra.mxu0 %v209
    %291 = vmatprep.subr.bf16.mxu0 0
    %292 = vmatpush1.bf16.xpose.msra.mxu0 %v210
    %293 = vmatprep.subr.bf16.mxu0 0
    %294 = vmatpush1.bf16.xpose.msra.mxu0 %v211
    %295 = vmatprep.subr.bf16.mxu0 0
    %296 = vmatpush1.bf16.xpose.msra.mxu0 0
    %297 = vmatprep.subr.bf16.mxu0 0
    %298 = vmatpush1.bf16.xpose.msra.mxu0 0
    %299 = vmatprep.subr.bf16.mxu0 0
    %300 = vmatpush1.bf16.xpose.msra.mxu0 0
    %301 = vmatprep.subr.bf16.mxu0 0
    %302 = vmatpush1.bf16.xpose.msra.mxu0 0
    %303 = vmatprep.subr.bf16.mxu0 0
    %304 = vmatpush1.bf16.xpose.msra.mxu0 0
    %305 = vmatprep.subr.bf16.mxu0 0
    %306 = vmatpush1.bf16.xpose.msra.mxu0 0
    %307 = vmatprep.subr.bf16.mxu0 0
    %308 = vmatpush1.bf16.xpose.msra.mxu0 0
    %309 = vmatprep.subr.bf16.mxu0 0
    %310 = vmatpush1.bf16.xpose.msra.mxu0 0
    %311 = vmatprep.mubr.bf16.mxu0 0
    %312 = vmatmul.mubr.bf16.gmra.mrb[0].mxu0 %v90
    %v313 = vpop.f32.mrb[0].mxu0
    %v314 = vadd.f32 0.0, %v313
    %v315 = vpop.f32.mrb[0].mxu0
    %v316 = vpop.f32.mrb[0].mxu0
    %v317 = vadd.f32 0.0, %v316
    %v318 = vpop.f32.mrb[0].mxu0
    %319 = vdwg.mxu0
    %v320 = vld [vmem:[%s2] sm:$0xff]
    %v321 = vld [vmem:[%s2 + $0x8] sm:$0xff]
    %v322 = vmul.f32 %v320, 30.0
    %v323 = vmul.f32 %v321, 30.0
    %325 = vset.pattern.permute.xlu0 0
    %326 = vperm.xlu0 %325, %v322
    %v327 = vpop.permute.xlu0 %326
    %330 = vset.pattern.permute.xlu0 0
    %331 = vperm.xlu0 %330, %v323
    %v332 = vpop.permute.xlu0 %331
    %v334 = vmul.f32 %v271, %v327
    %v335 = vmul.f32 %v273, %v327
    %v336 = vmul.f32 %v314, %v327
    %v337 = vmul.f32 %v275, %v332
    %v338 = vmul.f32 %v277, %v332
    %v339 = vmul.f32 %v317, %v332
    %v340 = vld [vmem:[%s3] sm:$0x7]
    %v342 = vlaneseq
    %v343 = vshrl.u32 %v342, 7
    %v344 = vsub.s32 0, %v343
    %v345 = vrot.slane %v340, %v344
    %v346 = vlaneseq
    %v347 = vshrl.u32 %v346, 7
    %v348 = vsub.s32 1, %v347
    %v349 = vrot.slane %v340, %v348
    %v350 = vlaneseq
    %v351 = vshrl.u32 %v350, 7
    %v352 = vsub.s32 2, %v351
    %v353 = vrot.slane %v340, %v352
    %v357 = vmul.f32 %v334, %v345
    %v358 = vmul.f32 %v335, %v349
    %v359 = vmul.f32 %v336, %v353
    %v360 = vmul.f32 %v337, %v345
    %v361 = vmul.f32 %v338, %v349
    %v362 = vmul.f32 %v339, %v353
    %v363 = vlaneseq
    %v364 = vand.u32 %v363, 127
    %v365 = vadd.s32 %v364, 128
    %v366 = vadd.s32 %v364, 256
    %s367 = smul.u32 0, 384
    %v368 = vstv %s367
    %v369 = vadd.s32 %v364, %v368
    %v370 = vadd.s32 %v365, %v368
    %v371 = vadd.s32 %v366, %v368
    %v372 = vld [vmem:[%s4] sm:$0xff]
    %v373 = vld [vmem:[%s4 + $0x8] sm:$0xff]
    %374 = vset.pattern.permute.xlu0 0
    %375 = vperm.xlu0 %374, %v372
    %v376 = vpop.permute.xlu0 %375
    %377 = vset.pattern.permute.xlu0 0
    %378 = vperm.xlu0 %377, %v373
    %v379 = vpop.permute.xlu0 %378
    %vm380 = vcmp.eq.s32.totalorder %v369, %v376
    %vm381 = vcmp.eq.s32.totalorder %v370, %v376
    %vm382 = vcmp.eq.s32.totalorder %v371, %v376
    %vm383 = vcmp.eq.s32.totalorder %v369, %v379
    %vm384 = vcmp.eq.s32.totalorder %v370, %v379
    %vm385 = vcmp.eq.s32.totalorder %v371, %v379
    %v386 = vsub.f32 %v357, 12.0
    %v387 = vsub.f32 %v358, 12.0
    %v388 = vsub.f32 %v359, 12.0
    %v389 = vsub.f32 %v360, 12.0
    %v390 = vsub.f32 %v361, 12.0
    %v391 = vsub.f32 %v362, 12.0
    %v392 = vsel %vm380, %v386, %v357
    %v393 = vsel %vm381, %v387, %v358
    %v394 = vsel %vm382, %v388, %v359
    %v395 = vsel %vm383, %v389, %v360
    %v396 = vsel %vm384, %v390, %v361
    %v397 = vsel %vm385, %v391, %v362
    %398 = vst [vmem:[#allocation5] sm:$0xff] %v392
    %399 = vst [vmem:[#allocation5 + $0x8] sm:$0xff] %v393
    %400 = vst [vmem:[#allocation5 + $0x10] sm:$0xff] %v394
    %401 = vst [vmem:[#allocation5 + $0x18] sm:$0xff] %v395
    %402 = vst [vmem:[#allocation5 + $0x20] sm:$0xff] %v396
    %403 = vst [vmem:[#allocation5 + $0x28] sm:$0xff] %v397
    // Predicated region
    $region26: #{tpu_custom_call.1} parent=1 // pred_check
      _
    $region27: #{tpu_custom_call.1} parent=1 // pred_check_branch
      %405 = sbr.rel (0) target = $region29
    $region28: #{tpu_custom_call.1} parent=1 // pred_region
      %s407 = ssub.s32 768, 768
      %408 = vsyncadd [#allocation4], %s407
      %s409 = sshll.u32 [#allocation5], 4
      %s410 = int_to_ptr.vmem [resolvable:$true] %s409
      %415 = dma.vmem_to_hbm [thread:$0]  %s410, 768, %s5, [#allocation4], 384, 384, 24
    $region29: #{tpu_custom_call.1} parent=1 // pred_fallthru
      _
    // Predicated region
    $region30: #{tpu_custom_call.1} parent=1 // pred_check
      _
    $region31: #{tpu_custom_call.1} parent=1 // pred_check_branch
      %417 = sbr.rel (0) target = $region33
    $region32: #{tpu_custom_call.1} parent=1 // pred_region
      %418 = dma.done [#allocation4], 768
    $region33: #{tpu_custom_call.1} parent=1 // pred_fallthru
      _
    %419 = vsyncpa [#allocation3], 1
    %420 = vsyncpa [#allocation4], 1

</llo_original>
